<compile_context>
chip_gen: v6e
topology: v6e:2x2x1
jax: 0.10.0
libtpu: 0.0.40
codegen_flags: <defaults>
</compile_context>

<pallas_src>
import functools
import math

import jax
import jax.numpy as jnp
from jax.experimental import pallas as pl
from jax.experimental.pallas import tpu as pltpu

LANE = 128


def _round_up(n, m):
    return ((n + m - 1) // m) * m


def _mlp_kernel(x_ref,
                w1_ref, b1_ref,
                w2_ref, b2_ref,
                w3_ref, b3_ref,
                w4_ref, b4_ref,
                wo_ref, bo_ref,
                o_ref):
    def layer(h_bf16, w_ref, b_ref):
        # bf16 x bf16 -> f32 accumulate on the MXU; bias+ReLU in f32 on the VPU.
        acc = jnp.dot(h_bf16, w_ref[...], preferred_element_type=jnp.float32)
        return jnp.maximum(acc + b_ref[...], 0.0).astype(jnp.bfloat16)

    # In-kernel bf16 cast of the raw f32 activation tile (no wrapper pass).
    h = x_ref[...].astype(jnp.bfloat16)          # (TB, D_in)
    h = layer(h, w1_ref, b1_ref)
    h = layer(h, w2_ref, b2_ref)
    h = layer(h, w3_ref, b3_ref)
    h = layer(h, w4_ref, b4_ref)

    logits = jnp.dot(h, wo_ref[...], preferred_element_type=jnp.float32)
    logits = logits + bo_ref[...]
    # sigmoid = 1 / (1 + exp(-x)); exp and approx-reciprocal both use the EUP.
    o_ref[...] = pl.reciprocal(1.0 + jnp.exp(-logits),
                               approx=True).astype(o_ref.dtype)


def discriminator_forward(x, params, d_out, *, block_b=1024,
                          out_dtype=jnp.bfloat16):
    """x: (B, D_in) float32.

    params: bf16 weights stored (in, out) — out dims (and the K dims of all
    layers except fc1) zero-padded to 128 lanes — plus f32 biases (1, out_pad).
    Returns (B, d_out) in `out_dtype` (bf16 by default to halve the output
    HBM stream; cast in the consumer if f32 probabilities are needed).
    """
    B, d_in = x.shape
    assert params["w1"].shape[0] == d_in
    d_out_pad = params["wo"].shape[1]

    # Pad the batch only to the 16-row sublane multiple (<=15 rows of copy);
    # anything beyond that is handled by a ragged last grid tile via pl.cdiv.
    b_pad = _round_up(B, 16)
    if b_pad != B:
        x = jnp.pad(x, ((0, b_pad - B), (0, 0)))

    # Batch tile: large to amortize the ~0.35us per-step overhead, 16-aligned
    # for bf16 sublane packing, and capped so the grid has >=2 steps whenever
    # the batch allows it (lets v7x shard the grid across its 2 TensorCores).
    tb = _round_up(min(block_b, b_pad), 16)
    if tb >= b_pad and b_pad >= 32:
        tb = _round_up(pl.cdiv(b_pad, 2), 16)
    grid_b = pl.cdiv(b_pad, tb)

    act_map = lambda i: (i, 0)       # activations walk the batch axis
    const_map = lambda i: (0, 0)     # weights/biases stay resident across tiles

    operands = [x]
    in_specs = [pl.BlockSpec((tb, d_in), act_map)]
    flops = 0
    weight_bytes = 0
    for n in ("1", "2", "3", "4", "o"):
        w = params["w" + n]
        b = params["b" + n]
        operands += [w, b]
        in_specs += [pl.BlockSpec(w.shape, const_map),
                     pl.BlockSpec(b.shape, const_map)]
        flops += 2 * b_pad * w.shape[0] * w.shape[1]
        weight_bytes += (w.size * w.dtype.itemsize + b.size * b.dtype.itemsize)

    cost = pl.CostEstimate(
        flops=int(flops),
        transcendentals=int(b_pad * d_out_pad),
        bytes_accessed=int(b_pad * d_in * x.dtype.itemsize
                           + weight_bytes
                           + b_pad * d_out_pad * jnp.dtype(out_dtype).itemsize))

    out = pl.pallas_call(
        _mlp_kernel,
        out_shape=jax.ShapeDtypeStruct((b_pad, d_out_pad), out_dtype),
        grid=(grid_b,),
        in_specs=in_specs,
        out_specs=pl.BlockSpec((tb, d_out_pad), act_map),
        compiler_params=pltpu.CompilerParams(
            dimension_semantics=("parallel",)),
        cost_estimate=cost,
    )(*operands)

    return out[:B, :d_out]


def init_params(key, d_in, d_out, w1, w2, w3, w4):
    """Xavier-uniform weights / PyTorch-default biases, stored transposed as
    (in, out) bf16 with output dims padded to 128 lanes.  fc1 keeps its
    unpadded K axis (= d_in) so the raw input needs no feature padding."""
    dims = [(d_in, w1), (w1, w2), (w2, w3), (w3, w4), (w4, d_out)]
    names = ["1", "2", "3", "4", "o"]
    ks = jax.random.split(key, 2 * len(dims))
    params = {}
    for i, ((fi, fo), n) in enumerate(zip(dims, names)):
        limit = math.sqrt(6.0 / (fi + fo))
        w = jax.random.uniform(ks[2 * i], (fi, fo), jnp.float32,
                               minval=-limit, maxval=limit)
        bb = 1.0 / math.sqrt(fi)
        b = jax.random.uniform(ks[2 * i + 1], (1, fo), jnp.float32,
                               minval=-bb, maxval=bb)
        fi_p = fi if i == 0 else _round_up(fi, LANE)   # fc1 K stays unpadded
        fo_p = _round_up(fo, LANE)
        w = jnp.pad(w, ((0, fi_p - fi), (0, fo_p - fo))).astype(jnp.bfloat16)
        b = jnp.pad(b, ((0, 0), (0, fo_p - fo)))
        params["w" + n] = w
        params["b" + n] = b
    return params


def _reference(x, params, d_out):
    """Pure-JAX reference following the same bf16/f32 dtype path (exact
    sigmoid; the kernel's approx reciprocal adds ~1e-3 relative error)."""
    h = x.astype(jnp.bfloat16)
    for n in ("1", "2", "3", "4"):
        acc = jnp.dot(h, params["w" + n], preferred_element_type=jnp.float32)
        h = jnp.maximum(acc + params["b" + n], 0.0).astype(jnp.bfloat16)
    logits = jnp.dot(h, params["wo"], preferred_element_type=jnp.float32)
    logits = logits + params["bo"]
    return jax.nn.sigmoid(logits)[:, :d_out]


if __name__ == "__main__":
    # Small, MLP-consistent shapes: discriminator(D_in, D_out, w1, w2, w3, w4).
    B, D_in, W1, W2, W3, W4, D_out = 8, 32, 64, 128, 64, 32, 8

    key = jax.random.PRNGKey(0)
    k_x, k_p = jax.random.split(key)
    x = jax.random.normal(k_x, (B, D_in), jnp.float32)
    params = init_params(k_p, D_in, D_out, W1, W2, W3, W4)

    fwd = jax.jit(functools.partial(discriminator_forward, d_out=D_out))
    y = jax.block_until_ready(fwd(x, params))

    assert y.shape == (B, D_out)
    y32 = y.astype(jnp.float32)
    y_ref = _reference(x, params, D_out)
    # Tolerance covers bf16 output rounding (~4e-3) + approx-reciprocal (~1e-3).
    assert bool(jnp.all(jnp.abs(y32 - y_ref) <= 2e-2)), "mismatch vs reference"
    assert bool(jnp.all((y32 >= -1e-3) & (y32 <= 1.0 + 1e-3)))
    print("KERNEL_OK")
</pallas_src>

<mosaic_0001>
module attributes {stable_mosaic.version = 11 : i64} {
  func.func @_mlp_kernel(%arg0: i32, %arg1: memref<16x32xf32, #tpu.memory_space<vmem>>, %arg2: memref<32x128xbf16, #tpu.memory_space<vmem>>, %arg3: memref<1x128xf32, #tpu.memory_space<vmem>>, %arg4: memref<128x128xbf16, #tpu.memory_space<vmem>>, %arg5: memref<1x128xf32, #tpu.memory_space<vmem>>, %arg6: memref<128x128xbf16, #tpu.memory_space<vmem>>, %arg7: memref<1x128xf32, #tpu.memory_space<vmem>>, %arg8: memref<128x128xbf16, #tpu.memory_space<vmem>>, %arg9: memref<1x128xf32, #tpu.memory_space<vmem>>, %arg10: memref<128x128xbf16, #tpu.memory_space<vmem>>, %arg11: memref<1x128xf32, #tpu.memory_space<vmem>>, %arg12: memref<16x128xbf16, #tpu.memory_space<vmem>>) attributes {dimension_semantics = [#tpu.dimension_semantics<parallel>], iteration_bounds = array<i64: 1>, scalar_prefetch = 0 : i64, scratch_operands = 0 : i64, tpu.core_type = #tpu.core_type<tc>, window_params = [{transform_indices = @transform_0, window_bounds = array<i64: 16, 32>}, {pipeline_mode = #tpu.pipeline_mode<synchronous>, transform_indices = @transform_1, window_bounds = array<i64: 32, 128>}, {pipeline_mode = #tpu.pipeline_mode<synchronous>, transform_indices = @transform_2, window_bounds = array<i64: 1, 128>}, {pipeline_mode = #tpu.pipeline_mode<synchronous>, transform_indices = @transform_3, window_bounds = array<i64: 128, 128>}, {pipeline_mode = #tpu.pipeline_mode<synchronous>, transform_indices = @transform_4, window_bounds = array<i64: 1, 128>}, {pipeline_mode = #tpu.pipeline_mode<synchronous>, transform_indices = @transform_5, window_bounds = array<i64: 128, 128>}, {pipeline_mode = #tpu.pipeline_mode<synchronous>, transform_indices = @transform_6, window_bounds = array<i64: 1, 128>}, {pipeline_mode = #tpu.pipeline_mode<synchronous>, transform_indices = @transform_7, window_bounds = array<i64: 128, 128>}, {pipeline_mode = #tpu.pipeline_mode<synchronous>, transform_indices = @transform_8, window_bounds = array<i64: 1, 128>}, {pipeline_mode = #tpu.pipeline_mode<synchronous>, transform_indices = @transform_9, window_bounds = array<i64: 128, 128>}, {pipeline_mode = #tpu.pipeline_mode<synchronous>, transform_indices = @transform_10, window_bounds = array<i64: 1, 128>}, {transform_indices = @transform_11, window_bounds = array<i64: 16, 128>}]} {
    %c0 = arith.constant 0 : index
    %c0_0 = arith.constant 0 : index
    %0 = vector.load %arg1[%c0, %c0_0] : memref<16x32xf32, #tpu.memory_space<vmem>>, vector<16x32xf32>
    %1 = arith.truncf %0 : vector<16x32xf32> to vector<16x32xbf16>
    %c0_1 = arith.constant 0 : index
    %c0_2 = arith.constant 0 : index
    %2 = vector.load %arg2[%c0_1, %c0_2] : memref<32x128xbf16, #tpu.memory_space<vmem>>, vector<32x128xbf16>
    %cst = arith.constant dense<0.000000e+00> : vector<16x128xf32>
    %3 = tpu.matmul %1, %2, %cst {dimension_numbers = #tpu.dot_dimension_numbers<[1], [0], [0], [1], [0, 0, 1, 1], [], []>} : vector<16x32xbf16>, vector<32x128xbf16>, vector<16x128xf32> -> vector<16x128xf32>
    %c0_3 = arith.constant 0 : index
    %c0_4 = arith.constant 0 : index
    %4 = vector.load %arg3[%c0_3, %c0_4] : memref<1x128xf32, #tpu.memory_space<vmem>>, vector<1x128xf32>
    %5 = vector.broadcast %4 : vector<1x128xf32> to vector<16x128xf32>
    %6 = arith.addf %3, %5 : vector<16x128xf32>
    %cst_5 = arith.constant 0.000000e+00 : f32
    %7 = vector.broadcast %cst_5 : f32 to vector<16x128xf32>
    %8 = arith.maximumf %6, %7 : vector<16x128xf32>
    %9 = arith.truncf %8 : vector<16x128xf32> to vector<16x128xbf16>
    %c0_6 = arith.constant 0 : index
    %c0_7 = arith.constant 0 : index
    %10 = vector.load %arg4[%c0_6, %c0_7] : memref<128x128xbf16, #tpu.memory_space<vmem>>, vector<128x128xbf16>
    %cst_8 = arith.constant dense<0.000000e+00> : vector<16x128xf32>
    %11 = tpu.matmul %9, %10, %cst_8 {dimension_numbers = #tpu.dot_dimension_numbers<[1], [0], [0], [1], [0, 0, 1, 1], [], []>} : vector<16x128xbf16>, vector<128x128xbf16>, vector<16x128xf32> -> vector<16x128xf32>
    %c0_9 = arith.constant 0 : index
    %c0_10 = arith.constant 0 : index
    %12 = vector.load %arg5[%c0_9, %c0_10] : memref<1x128xf32, #tpu.memory_space<vmem>>, vector<1x128xf32>
    %13 = vector.broadcast %12 : vector<1x128xf32> to vector<16x128xf32>
    %14 = arith.addf %11, %13 : vector<16x128xf32>
    %cst_11 = arith.constant 0.000000e+00 : f32
    %15 = vector.broadcast %cst_11 : f32 to vector<16x128xf32>
    %16 = arith.maximumf %14, %15 : vector<16x128xf32>
    %17 = arith.truncf %16 : vector<16x128xf32> to vector<16x128xbf16>
    %c0_12 = arith.constant 0 : index
    %c0_13 = arith.constant 0 : index
    %18 = vector.load %arg6[%c0_12, %c0_13] : memref<128x128xbf16, #tpu.memory_space<vmem>>, vector<128x128xbf16>
    %cst_14 = arith.constant dense<0.000000e+00> : vector<16x128xf32>
    %19 = tpu.matmul %17, %18, %cst_14 {dimension_numbers = #tpu.dot_dimension_numbers<[1], [0], [0], [1], [0, 0, 1, 1], [], []>} : vector<16x128xbf16>, vector<128x128xbf16>, vector<16x128xf32> -> vector<16x128xf32>
    %c0_15 = arith.constant 0 : index
    %c0_16 = arith.constant 0 : index
    %20 = vector.load %arg7[%c0_15, %c0_16] : memref<1x128xf32, #tpu.memory_space<vmem>>, vector<1x128xf32>
    %21 = vector.broadcast %20 : vector<1x128xf32> to vector<16x128xf32>
    %22 = arith.addf %19, %21 : vector<16x128xf32>
    %cst_17 = arith.constant 0.000000e+00 : f32
    %23 = vector.broadcast %cst_17 : f32 to vector<16x128xf32>
    %24 = arith.maximumf %22, %23 : vector<16x128xf32>
    %25 = arith.truncf %24 : vector<16x128xf32> to vector<16x128xbf16>
    %c0_18 = arith.constant 0 : index
    %c0_19 = arith.constant 0 : index
    %26 = vector.load %arg8[%c0_18, %c0_19] : memref<128x128xbf16, #tpu.memory_space<vmem>>, vector<128x128xbf16>
    %cst_20 = arith.constant dense<0.000000e+00> : vector<16x128xf32>
    %27 = tpu.matmul %25, %26, %cst_20 {dimension_numbers = #tpu.dot_dimension_numbers<[1], [0], [0], [1], [0, 0, 1, 1], [], []>} : vector<16x128xbf16>, vector<128x128xbf16>, vector<16x128xf32> -> vector<16x128xf32>
    %c0_21 = arith.constant 0 : index
    %c0_22 = arith.constant 0 : index
    %28 = vector.load %arg9[%c0_21, %c0_22] : memref<1x128xf32, #tpu.memory_space<vmem>>, vector<1x128xf32>
    %29 = vector.broadcast %28 : vector<1x128xf32> to vector<16x128xf32>
    %30 = arith.addf %27, %29 : vector<16x128xf32>
    %cst_23 = arith.constant 0.000000e+00 : f32
    %31 = vector.broadcast %cst_23 : f32 to vector<16x128xf32>
    %32 = arith.maximumf %30, %31 : vector<16x128xf32>
    %33 = arith.truncf %32 : vector<16x128xf32> to vector<16x128xbf16>
    %c0_24 = arith.constant 0 : index
    %c0_25 = arith.constant 0 : index
    %34 = vector.load %arg10[%c0_24, %c0_25] : memref<128x128xbf16, #tpu.memory_space<vmem>>, vector<128x128xbf16>
    %cst_26 = arith.constant dense<0.000000e+00> : vector<16x128xf32>
    %35 = tpu.matmul %33, %34, %cst_26 {dimension_numbers = #tpu.dot_dimension_numbers<[1], [0], [0], [1], [0, 0, 1, 1], [], []>} : vector<16x128xbf16>, vector<128x128xbf16>, vector<16x128xf32> -> vector<16x128xf32>
    %c0_27 = arith.constant 0 : index
    %c0_28 = arith.constant 0 : index
    %36 = vector.load %arg11[%c0_27, %c0_28] : memref<1x128xf32, #tpu.memory_space<vmem>>, vector<1x128xf32>
    %37 = vector.broadcast %36 : vector<1x128xf32> to vector<16x128xf32>
    %38 = arith.addf %35, %37 : vector<16x128xf32>
    %cst_29 = arith.constant 0.000000e+00 : f32
    %39 = vector.broadcast %cst_29 : f32 to vector<16x128xf32>
    %40 = arith.subf %39, %38 : vector<16x128xf32>
    %41 = math.exp %40 : vector<16x128xf32>
    %cst_30 = arith.constant 1.000000e+00 : f32
    %42 = vector.broadcast %cst_30 : f32 to vector<16x128xf32>
    %43 = arith.addf %42, %41 : vector<16x128xf32>
    %44 = tpu.reciprocal %43 {approx = true} : vector<16x128xf32> -> vector<16x128xf32>
    %45 = arith.truncf %44 : vector<16x128xf32> to vector<16x128xbf16>
    %c0_31 = arith.constant 0 : index
    %c0_32 = arith.constant 0 : index
    %46 = vector.load %arg12[%c0_31, %c0_32] : memref<16x128xbf16, #tpu.memory_space<vmem>>, vector<16x128xbf16>
    tpu.vector_store %arg12[%c0_31, %c0_32], %45 {strides = array<i32>} : memref<16x128xbf16, #tpu.memory_space<vmem>>, vector<16x128xbf16>,
    return
  }
  func.func @transform_0(%arg0: i32) -> (i32, i32) {
    %c0_i32 = arith.constant 0 : i32
    %c0_i32_0 = arith.constant 0 : i32
    return %arg0, %c0_i32 : i32, i32
  }
  func.func @transform_1(%arg0: i32) -> (i32, i32) {
    %c0_i32 = arith.constant 0 : i32
    %c0_i32_0 = arith.constant 0 : i32
    %c0_i32_1 = arith.constant 0 : i32
    return %c0_i32, %c0_i32_0 : i32, i32
  }
  func.func @transform_2(%arg0: i32) -> (i32, i32) {
    %c0_i32 = arith.constant 0 : i32
    %c0_i32_0 = arith.constant 0 : i32
    %c0_i32_1 = arith.constant 0 : i32
    return %c0_i32, %c0_i32_0 : i32, i32
  }
  func.func @transform_3(%arg0: i32) -> (i32, i32) {
    %c0_i32 = arith.constant 0 : i32
    %c0_i32_0 = arith.constant 0 : i32
    %c0_i32_1 = arith.constant 0 : i32
    return %c0_i32, %c0_i32_0 : i32, i32
  }
  func.func @transform_4(%arg0: i32) -> (i32, i32) {
    %c0_i32 = arith.constant 0 : i32
    %c0_i32_0 = arith.constant 0 : i32
    %c0_i32_1 = arith.constant 0 : i32
    return %c0_i32, %c0_i32_0 : i32, i32
  }
  func.func @transform_5(%arg0: i32) -> (i32, i32) {
    %c0_i32 = arith.constant 0 : i32
    %c0_i32_0 = arith.constant 0 : i32
    %c0_i32_1 = arith.constant 0 : i32
    return %c0_i32, %c0_i32_0 : i32, i32
  }
  func.func @transform_6(%arg0: i32) -> (i32, i32) {
    %c0_i32 = arith.constant 0 : i32
    %c0_i32_0 = arith.constant 0 : i32
    %c0_i32_1 = arith.constant 0 : i32
    return %c0_i32, %c0_i32_0 : i32, i32
  }
  func.func @transform_7(%arg0: i32) -> (i32, i32) {
    %c0_i32 = arith.constant 0 : i32
    %c0_i32_0 = arith.constant 0 : i32
    %c0_i32_1 = arith.constant 0 : i32
    return %c0_i32, %c0_i32_0 : i32, i32
  }
  func.func @transform_8(%arg0: i32) -> (i32, i32) {
    %c0_i32 = arith.constant 0 : i32
    %c0_i32_0 = arith.constant 0 : i32
    %c0_i32_1 = arith.constant 0 : i32
    return %c0_i32, %c0_i32_0 : i32, i32
  }
  func.func @transform_9(%arg0: i32) -> (i32, i32) {
    %c0_i32 = arith.constant 0 : i32
    %c0_i32_0 = arith.constant 0 : i32
    %c0_i32_1 = arith.constant 0 : i32
    return %c0_i32, %c0_i32_0 : i32, i32
  }
  func.func @transform_10(%arg0: i32) -> (i32, i32) {
    %c0_i32 = arith.constant 0 : i32
    %c0_i32_0 = arith.constant 0 : i32
    %c0_i32_1 = arith.constant 0 : i32
    return %c0_i32, %c0_i32_0 : i32, i32
  }
  func.func @transform_11(%arg0: i32) -> (i32, i32) {
    %c0_i32 = arith.constant 0 : i32
    %c0_i32_0 = arith.constant 0 : i32
    return %arg0, %c0_i32 : i32, i32
  }
}

</mosaic_0001>

<llo_original>
// kernel: discriminator_forward.1
$region0: #{discriminator_forward.1}
  #allocation0 [shape = 'u32[]', space=smem, size = 0x4, offset = 0x4, fixed_abs, tag = 'smem constant byte address 0x4 - core index']
  #allocation1 [shape = 'u32[144,128]{1,0:T(1,128)}', space=vmem, size = 0x12000, scoped, tag = 'internal scratch']
  %s0 = inlined_call_operand.vmem [shape: f32[16,32], index: 0, kind: input, shape index: {}]
  %s1 = inlined_call_operand.vmem [shape: bf16[32,128], index: 1, kind: input, shape index: {}]
  %s2 = inlined_call_operand.vmem [shape: f32[1,128], index: 2, kind: input, shape index: {}]
  %s3 = inlined_call_operand.hbm [shape: bf16[128,128], index: 3, kind: input, shape index: {}]
  %s4 = inlined_call_operand.vmem [shape: f32[1,128], index: 4, kind: input, shape index: {}]
  %s5 = inlined_call_operand.hbm [shape: bf16[128,128], index: 5, kind: input, shape index: {}]
  %s6 = inlined_call_operand.vmem [shape: f32[1,128], index: 6, kind: input, shape index: {}]
  %s7 = inlined_call_operand.hbm [shape: bf16[128,128], index: 7, kind: input, shape index: {}]
  %s8 = inlined_call_operand.vmem [shape: f32[1,128], index: 8, kind: input, shape index: {}]
  %s9 = inlined_call_operand.hbm [shape: bf16[128,128], index: 9, kind: input, shape index: {}]
  %s10 = inlined_call_operand.vmem [shape: f32[1,128], index: 10, kind: input, shape index: {}]
  %s11 = inlined_call_operand.vmem [shape: bf16[16,128], index: 11, kind: output, shape index: {}]
  %s12 = sld [smem:[#allocation0]]
  $region70: #{discriminator_forward.1} parent=0
    _
  %s14 = ssub.s32 1, %s12
  %s15 = scalar_select 0, %s14, %s12
  $region1: #{discriminator_forward.1} parent=0
    #allocation2 [shape = 'u8[32768]{0}', space=vmem, size = 0x8000, scoped, tag = 'input window, operand 3, single buffered']
    #allocation3 [shape = 's32[1]{0}', space=sflag, size = 0x4, scoped, tag = 'scoped memory for discriminator_forward.1']
    #allocation4 [shape = 'u8[32768]{0}', space=vmem, size = 0x8000, scoped, tag = 'input window, operand 5, single buffered']
    #allocation5 [shape = 's32[1]{0}', space=sflag, size = 0x4, scoped, tag = 'scoped memory for discriminator_forward.1']
    #allocation6 [shape = 'u8[32768]{0}', space=vmem, size = 0x8000, scoped, tag = 'input window, operand 7, single buffered']
    #allocation7 [shape = 'u8[32768]{0}', space=vmem, size = 0x8000, scoped, tag = 'input window, operand 9, single buffered']
    #allocation8 [shape = 's32[1]{0}', space=sflag, size = 0x4, scoped, tag = 'scoped memory for discriminator_forward.1']
    %16 = vsyncpa [#allocation3], 0
    %17 = vsyncpa [#allocation5], 0
    %18 = vsyncpa [#allocation8], 0
    // Predicated region
    $region2: #{discriminator_forward.1} parent=1 // pred_check
      _
    $region3: #{discriminator_forward.1} parent=1 // pred_check_branch
      %20 = sbr.rel (0) target = $region5
    $region4: #{discriminator_forward.1} parent=1 // pred_region
      _
    $region5: #{discriminator_forward.1} parent=1 // pred_fallthru
      _
    // Predicated region
    $region6: #{discriminator_forward.1} parent=1 // pred_check
      _
    $region7: #{discriminator_forward.1} parent=1 // pred_check_branch
      %22 = sbr.rel (0) target = $region9
    $region8: #{discriminator_forward.1} parent=1 // pred_region
      _
    $region9: #{discriminator_forward.1} parent=1 // pred_fallthru
      _
    // Predicated region
    $region10: #{discriminator_forward.1} parent=1 // pred_check
      _
    $region11: #{discriminator_forward.1} parent=1 // pred_check_branch
      %24 = sbr.rel (0) target = $region13
    $region12: #{discriminator_forward.1} parent=1 // pred_region
      _
    $region13: #{discriminator_forward.1} parent=1 // pred_fallthru
      _
    // Predicated region
    $region14: #{discriminator_forward.1} parent=1 // pred_check
      _
    $region15: #{discriminator_forward.1} parent=1 // pred_check_branch
      %26 = sbr.rel (0) target = $region17
    $region16: #{discriminator_forward.1} parent=1 // pred_region
      %s28 = ssub.s32 1024, 1024
      %29 = vsyncadd [#allocation3], %s28
      %s30 = sshll.u32 [#allocation2], 4
      %s31 = int_to_ptr.vmem [resolvable:$true] %s30
      %36 = dma.hbm_to_vmem [thread:$0]  %s3, 1024, %s31, [#allocation3], 64, 64, 4
    $region17: #{discriminator_forward.1} parent=1 // pred_fallthru
      _
    // Predicated region
    $region18: #{discriminator_forward.1} parent=1 // pred_check
      _
    $region19: #{discriminator_forward.1} parent=1 // pred_check_branch
      %38 = sbr.rel (0) target = $region21
    $region20: #{discriminator_forward.1} parent=1 // pred_region
      _
    $region21: #{discriminator_forward.1} parent=1 // pred_fallthru
      _
    // Predicated region
    $region22: #{discriminator_forward.1} parent=1 // pred_check
      _
    $region23: #{discriminator_forward.1} parent=1 // pred_check_branch
      %40 = sbr.rel (0) target = $region25
    $region24: #{discriminator_forward.1} parent=1 // pred_region
      %s42 = ssub.s32 1024, 1024
      %43 = vsyncadd [#allocation5], %s42
      %s44 = sshll.u32 [#allocation4], 4
      %s45 = int_to_ptr.vmem [resolvable:$true] %s44
      %50 = dma.hbm_to_vmem [thread:$0]  %s5, 1024, %s45, [#allocation5], 64, 64, 4
    $region25: #{discriminator_forward.1} parent=1 // pred_fallthru
      _
    // Predicated region
    $region26: #{discriminator_forward.1} parent=1 // pred_check
      _
    $region27: #{discriminator_forward.1} parent=1 // pred_check_branch
      %52 = sbr.rel (0) target = $region29
    $region28: #{discriminator_forward.1} parent=1 // pred_region
      _
    $region29: #{discriminator_forward.1} parent=1 // pred_fallthru
      _
    // Predicated region
    $region30: #{discriminator_forward.1} parent=1 // pred_check
      _
    $region31: #{discriminator_forward.1} parent=1 // pred_check_branch
      %54 = sbr.rel (0) target = $region33
    $region32: #{discriminator_forward.1} parent=1 // pred_region
      %s56 = ssub.s32 1024, 1024
      %57 = vsyncadd [#allocation5], %s56
      %s58 = sshll.u32 [#allocation6], 4
      %s59 = int_to_ptr.vmem [resolvable:$true] %s58
      %64 = dma.hbm_to_vmem [thread:$0]  %s7, 1024, %s59, [#allocation5], 64, 64, 4
    $region33: #{discriminator_forward.1} parent=1 // pred_fallthru
      _
    // Predicated region
    $region34: #{discriminator_forward.1} parent=1 // pred_check
      _
    $region35: #{discriminator_forward.1} parent=1 // pred_check_branch
      %66 = sbr.rel (0) target = $region37
    $region36: #{discriminator_forward.1} parent=1 // pred_region
      _
    $region37: #{discriminator_forward.1} parent=1 // pred_fallthru
      _
    // Predicated region
    $region38: #{discriminator_forward.1} parent=1 // pred_check
      _
    $region39: #{discriminator_forward.1} parent=1 // pred_check_branch
      %68 = sbr.rel (0) target = $region41
    $region40: #{discriminator_forward.1} parent=1 // pred_region
      %s70 = ssub.s32 1024, 1024
      %71 = vsyncadd [#allocation8], %s70
      %s72 = sshll.u32 [#allocation7], 4
      %s73 = int_to_ptr.vmem [resolvable:$true] %s72
      %78 = dma.hbm_to_vmem [thread:$0]  %s9, 1024, %s73, [#allocation8], 64, 64, 4
    $region41: #{discriminator_forward.1} parent=1 // pred_fallthru
      _
    // Predicated region
    $region42: #{discriminator_forward.1} parent=1 // pred_check
      _
    $region43: #{discriminator_forward.1} parent=1 // pred_check_branch
      %80 = sbr.rel (0) target = $region45
    $region44: #{discriminator_forward.1} parent=1 // pred_region
      _
    $region45: #{discriminator_forward.1} parent=1 // pred_fallthru
      _
    // Predicated region
    $region46: #{discriminator_forward.1} parent=1 // pred_check
      _
    $region47: #{discriminator_forward.1} parent=1 // pred_check_branch
      %82 = sbr.rel (0) target = $region49
    $region48: #{discriminator_forward.1} parent=1 // pred_region
      %83 = dma.done [#allocation3], 1024
    $region49: #{discriminator_forward.1} parent=1 // pred_fallthru
      _
    // Predicated region
    $region50: #{discriminator_forward.1} parent=1 // pred_check
      _
    $region51: #{discriminator_forward.1} parent=1 // pred_check_branch
      %85 = sbr.rel (0) target = $region53
    $region52: #{discriminator_forward.1} parent=1 // pred_region
      %86 = dma.done [#allocation5], 1024
    $region53: #{discriminator_forward.1} parent=1 // pred_fallthru
      _
    // Predicated region
    $region54: #{discriminator_forward.1} parent=1 // pred_check
      _
    $region55: #{discriminator_forward.1} parent=1 // pred_check_branch
      %88 = sbr.rel (0) target = $region57
    $region56: #{discriminator_forward.1} parent=1 // pred_region
      %89 = dma.done [#allocation5], 1024
    $region57: #{discriminator_forward.1} parent=1 // pred_fallthru
      _
    // Predicated region
    $region58: #{discriminator_forward.1} parent=1 // pred_check
      _
    $region59: #{discriminator_forward.1} parent=1 // pred_check_branch
      %91 = sbr.rel (0) target = $region61
    $region60: #{discriminator_forward.1} parent=1 // pred_region
      %92 = dma.done [#allocation8], 1024
    $region61: #{discriminator_forward.1} parent=1 // pred_fallthru
      _
    %v94 = vld [vmem:[%s0] sm:$0xff]
    %v95 = vld [vmem:[%s0 + $0x8] sm:$0xff]
    %v96 = vpack.c.bf16 %v95, %v94
    %v97 = vld [vmem:[%s1] sm:$0xf]
    %v98 = vld [vmem:[%s1 + $0x4] sm:$0xf]
    %v99 = vld [vmem:[%s1 + $0x8] sm:$0xf]
    %v100 = vld [vmem:[%s1 + $0xc] sm:$0xf]
    %v101 = vld [vmem:[%s2] sm:$0x1]
    %v103 = vlaneseq
    %v104 = vshrl.u32 %v103, 7
    %v105 = vsub.s32 0, %v104
    %v106 = vrot.slane %v101, %v105
    %v112 = vunpack.c.l.b16 %v97
    %v113 = vunpack.c.l.b16 %v98
    %v114 = vunpack.c.l.b16 %v99
    %v115 = vunpack.c.l.b16 %v100
    %v116 = vpack.c.b16 %v113, %v112
    %v117 = vpack.c.b16 %v115, %v114
    %vm120 = vcmask 261120
    %v122 = vsel %vm120, %v96, 0
    %124 = vmatprep.subr.bf16.mxu0 0
    %125 = vmatpush1.bf16.msra.mxu0 0
    %126 = vmatprep.subr.bf16.mxu0 0
    %127 = vmatpush1.bf16.msra.mxu0 0
    %128 = vmatprep.subr.bf16.mxu0 0
    %129 = vmatpush1.bf16.msra.mxu0 0
    %130 = vmatprep.subr.bf16.mxu0 0
    %131 = vmatpush1.bf16.msra.mxu0 0
    %132 = vmatprep.subr.bf16.mxu0 0
    %133 = vmatpush1.bf16.msra.mxu0 0
    %134 = vmatprep.subr.bf16.mxu0 0
    %135 = vmatpush1.bf16.msra.mxu0 0
    %136 = vmatprep.subr.bf16.mxu0 0
    %137 = vmatpush1.bf16.msra.mxu0 %v117
    %138 = vmatprep.subr.bf16.mxu0 0
    %139 = vmatpush1.bf16.msra.mxu0 %v116
    %140 = vmatprep.subr.bf16.mxu0 0
    %141 = vmatpush2.bf16.msra.mxu0 0
    %142 = vmatprep.subr.bf16.mxu0 0
    %143 = vmatpush2.bf16.msra.mxu0 0
    %144 = vmatprep.subr.bf16.mxu0 0
    %145 = vmatpush2.bf16.msra.mxu0 0
    %146 = vmatprep.subr.bf16.mxu0 0
    %147 = vmatpush2.bf16.msra.mxu0 0
    %148 = vmatprep.subr.bf16.mxu0 0
    %149 = vmatpush2.bf16.msra.mxu0 0
    %150 = vmatprep.subr.bf16.mxu0 0
    %151 = vmatpush2.bf16.msra.mxu0 0
    %152 = vmatprep.subr.bf16.mxu0 0
    %153 = vmatpush2.bf16.msra.mxu0 0
    %154 = vmatprep.subr.bf16.mxu0 0
    %155 = vmatpush2.bf16.msra.mxu0 0
    %156 = vmatprep.mubr.bf16.mxu0 0
    %157 = vmatmul.mubr.bf16.gmra.mxu0 %v122
    %v158 = vpop.f32.mrf.mxu0
    %v159 = vadd.f32 %v106, %v158
    %v160 = vpop.f32.mrf.mxu0
    %v161 = vpop.f32.mrf.mxu0
    %v162 = vadd.f32 %v106, %v161
    %v163 = vpop.f32.mrf.mxu0
    %164 = vdwg.mxu0
    %v165 = vmax.f32 %v159, 0.0
    %v166 = vmax.f32 %v162, 0.0
    %v167 = vpack.c.bf16 %v166, %v165
    %v168 = vld [vmem:[#allocation2] sm:$0xf]
    %v169 = vld [vmem:[#allocation2 + $0x4] sm:$0xf]
    %v170 = vld [vmem:[#allocation2 + $0x8] sm:$0xf]
    %v171 = vld [vmem:[#allocation2 + $0xc] sm:$0xf]
    %v172 = vld [vmem:[#allocation2 + $0x10] sm:$0xf]
    %v173 = vld [vmem:[#allocation2 + $0x14] sm:$0xf]
    %v174 = vld [vmem:[#allocation2 + $0x18] sm:$0xf]
    %v175 = vld [vmem:[#allocation2 + $0x1c] sm:$0xf]
    %v176 = vld [vmem:[#allocation2 + $0x20] sm:$0xf]
    %v177 = vld [vmem:[#allocation2 + $0x24] sm:$0xf]
    %v178 = vld [vmem:[#allocation2 + $0x28] sm:$0xf]
    %v179 = vld [vmem:[#allocation2 + $0x2c] sm:$0xf]
    %v180 = vld [vmem:[#allocation2 + $0x30] sm:$0xf]
    %v181 = vld [vmem:[#allocation2 + $0x34] sm:$0xf]
    %v182 = vld [vmem:[#allocation2 + $0x38] sm:$0xf]
    %v183 = vld [vmem:[#allocation2 + $0x3c] sm:$0xf]
    %v184 = vld [vmem:[%s4] sm:$0x1]
    %v186 = vlaneseq
    %v187 = vshrl.u32 %v186, 7
    %v188 = vsub.s32 0, %v187
    %v189 = vrot.slane %v184, %v188
    %v207 = vunpack.c.l.b16 %v168
    %v208 = vunpack.c.l.b16 %v169
    %v209 = vunpack.c.l.b16 %v170
    %v210 = vunpack.c.l.b16 %v171
    %v211 = vunpack.c.l.b16 %v172
    %v212 = vunpack.c.l.b16 %v173
    %v213 = vunpack.c.l.b16 %v174
    %v214 = vunpack.c.l.b16 %v175
    %v215 = vunpack.c.l.b16 %v176
    %v216 = vunpack.c.l.b16 %v177
    %v217 = vunpack.c.l.b16 %v178
    %v218 = vunpack.c.l.b16 %v179
    %v219 = vunpack.c.l.b16 %v180
    %v220 = vunpack.c.l.b16 %v181
    %v221 = vunpack.c.l.b16 %v182
    %v222 = vunpack.c.l.b16 %v183
    %v223 = vpack.c.b16 %v208, %v207
    %v224 = vpack.c.b16 %v210, %v209
    %v225 = vpack.c.b16 %v212, %v211
    %v226 = vpack.c.b16 %v214, %v213
    %v227 = vpack.c.b16 %v216, %v215
    %v228 = vpack.c.b16 %v218, %v217
    %v229 = vpack.c.b16 %v220, %v219
    %v230 = vpack.c.b16 %v222, %v221
    %239 = vmatprep.subr.bf16.mxu0 0
    %240 = vmatpush1.bf16.msra.mxu0 %v230
    %241 = vmatprep.subr.bf16.mxu0 0
    %242 = vmatpush1.bf16.msra.mxu0 %v229
    %243 = vmatprep.subr.bf16.mxu0 0
    %244 = vmatpush1.bf16.msra.mxu0 %v228
    %245 = vmatprep.subr.bf16.mxu0 0
    %246 = vmatpush1.bf16.msra.mxu0 %v227
    %247 = vmatprep.subr.bf16.mxu0 0
    %248 = vmatpush1.bf16.msra.mxu0 %v226
    %249 = vmatprep.subr.bf16.mxu0 0
    %250 = vmatpush1.bf16.msra.mxu0 %v225
    %251 = vmatprep.subr.bf16.mxu0 0
    %252 = vmatpush1.bf16.msra.mxu0 %v224
    %253 = vmatprep.subr.bf16.mxu0 0
    %254 = vmatpush1.bf16.msra.mxu0 %v223
    %255 = vmatprep.subr.bf16.mxu0 0
    %256 = vmatpush2.bf16.msra.mxu0 0
    %257 = vmatprep.subr.bf16.mxu0 0
    %258 = vmatpush2.bf16.msra.mxu0 0
    %259 = vmatprep.subr.bf16.mxu0 0
    %260 = vmatpush2.bf16.msra.mxu0 0
    %261 = vmatprep.subr.bf16.mxu0 0
    %262 = vmatpush2.bf16.msra.mxu0 0
    %263 = vmatprep.subr.bf16.mxu0 0
    %264 = vmatpush2.bf16.msra.mxu0 0
    %265 = vmatprep.subr.bf16.mxu0 0
    %266 = vmatpush2.bf16.msra.mxu0 0
    %267 = vmatprep.subr.bf16.mxu0 0
    %268 = vmatpush2.bf16.msra.mxu0 0
    %269 = vmatprep.subr.bf16.mxu0 0
    %270 = vmatpush2.bf16.msra.mxu0 0
    %271 = vmatprep.mubr.bf16.mxu0 0
    %272 = vmatmul.mubr.bf16.gmra.mxu0 %v167
    %v273 = vpop.f32.mrf.mxu0
    %v274 = vadd.f32 %v189, %v273
    %v275 = vpop.f32.mrf.mxu0
    %v276 = vpop.f32.mrf.mxu0
    %v277 = vadd.f32 %v189, %v276
    %v278 = vpop.f32.mrf.mxu0
    %279 = vdwg.mxu0
    %v280 = vmax.f32 %v274, 0.0
    %v281 = vmax.f32 %v277, 0.0
    %v282 = vpack.c.bf16 %v281, %v280
    %v283 = vld [vmem:[#allocation4] sm:$0xf]
    %v284 = vld [vmem:[#allocation4 + $0x4] sm:$0xf]
    %v285 = vld [vmem:[#allocation4 + $0x8] sm:$0xf]
    %v286 = vld [vmem:[#allocation4 + $0xc] sm:$0xf]
    %v287 = vld [vmem:[#allocation4 + $0x10] sm:$0xf]
    %v288 = vld [vmem:[#allocation4 + $0x14] sm:$0xf]
    %v289 = vld [vmem:[#allocation4 + $0x18] sm:$0xf]
    %v290 = vld [vmem:[#allocation4 + $0x1c] sm:$0xf]
    %v291 = vld [vmem:[#allocation4 + $0x20] sm:$0xf]
    %v292 = vld [vmem:[#allocation4 + $0x24] sm:$0xf]
    %v293 = vld [vmem:[#allocation4 + $0x28] sm:$0xf]
    %v294 = vld [vmem:[#allocation4 + $0x2c] sm:$0xf]
    %v295 = vld [vmem:[#allocation4 + $0x30] sm:$0xf]
    %v296 = vld [vmem:[#allocation4 + $0x34] sm:$0xf]
    %v297 = vld [vmem:[#allocation4 + $0x38] sm:$0xf]
    %v298 = vld [vmem:[#allocation4 + $0x3c] sm:$0xf]
    %v299 = vld [vmem:[%s6] sm:$0x1]
    %v301 = vlaneseq
    %v302 = vshrl.u32 %v301, 7
    %v303 = vsub.s32 0, %v302
    %v304 = vrot.slane %v299, %v303
    %v322 = vunpack.c.l.b16 %v283
    %v323 = vunpack.c.l.b16 %v284
    %v324 = vunpack.c.l.b16 %v285
    %v325 = vunpack.c.l.b16 %v286
    %v326 = vunpack.c.l.b16 %v287
    %v327 = vunpack.c.l.b16 %v288
    %v328 = vunpack.c.l.b16 %v289
    %v329 = vunpack.c.l.b16 %v290
    %v330 = vunpack.c.l.b16 %v291
    %v331 = vunpack.c.l.b16 %v292
    %v332 = vunpack.c.l.b16 %v293
    %v333 = vunpack.c.l.b16 %v294
    %v334 = vunpack.c.l.b16 %v295
    %v335 = vunpack.c.l.b16 %v296
    %v336 = vunpack.c.l.b16 %v297
    %v337 = vunpack.c.l.b16 %v298
    %v338 = vpack.c.b16 %v323, %v322
    %v339 = vpack.c.b16 %v325, %v324
    %v340 = vpack.c.b16 %v327, %v326
    %v341 = vpack.c.b16 %v329, %v328
    %v342 = vpack.c.b16 %v331, %v330
    %v343 = vpack.c.b16 %v333, %v332
    %v344 = vpack.c.b16 %v335, %v334
    %v345 = vpack.c.b16 %v337, %v336
    %354 = vmatprep.subr.bf16.mxu0 0
    %355 = vmatpush1.bf16.msra.mxu0 %v345
    %356 = vmatprep.subr.bf16.mxu0 0
    %357 = vmatpush1.bf16.msra.mxu0 %v344
    %358 = vmatprep.subr.bf16.mxu0 0
    %359 = vmatpush1.bf16.msra.mxu0 %v343
    %360 = vmatprep.subr.bf16.mxu0 0
    %361 = vmatpush1.bf16.msra.mxu0 %v342
    %362 = vmatprep.subr.bf16.mxu0 0
    %363 = vmatpush1.bf16.msra.mxu0 %v341
    %364 = vmatprep.subr.bf16.mxu0 0
    %365 = vmatpush1.bf16.msra.mxu0 %v340
    %366 = vmatprep.subr.bf16.mxu0 0
    %367 = vmatpush1.bf16.msra.mxu0 %v339
    %368 = vmatprep.subr.bf16.mxu0 0
    %369 = vmatpush1.bf16.msra.mxu0 %v338
    %370 = vmatprep.subr.bf16.mxu0 0
    %371 = vmatpush2.bf16.msra.mxu0 0
    %372 = vmatprep.subr.bf16.mxu0 0
    %373 = vmatpush2.bf16.msra.mxu0 0
    %374 = vmatprep.subr.bf16.mxu0 0
    %375 = vmatpush2.bf16.msra.mxu0 0
    %376 = vmatprep.subr.bf16.mxu0 0
    %377 = vmatpush2.bf16.msra.mxu0 0
    %378 = vmatprep.subr.bf16.mxu0 0
    %379 = vmatpush2.bf16.msra.mxu0 0
    %380 = vmatprep.subr.bf16.mxu0 0
    %381 = vmatpush2.bf16.msra.mxu0 0
    %382 = vmatprep.subr.bf16.mxu0 0
    %383 = vmatpush2.bf16.msra.mxu0 0
    %384 = vmatprep.subr.bf16.mxu0 0
    %385 = vmatpush2.bf16.msra.mxu0 0
    %386 = vmatprep.mubr.bf16.mxu0 0
    %387 = vmatmul.mubr.bf16.gmra.mxu0 %v282
    %v388 = vpop.f32.mrf.mxu0
    %v389 = vadd.f32 %v304, %v388
    %v390 = vpop.f32.mrf.mxu0
    %v391 = vpop.f32.mrf.mxu0
    %v392 = vadd.f32 %v304, %v391
    %v393 = vpop.f32.mrf.mxu0
    %394 = vdwg.mxu0
    %v395 = vmax.f32 %v389, 0.0
    %v396 = vmax.f32 %v392, 0.0
    %v397 = vpack.c.bf16 %v396, %v395
    %v398 = vld [vmem:[#allocation6] sm:$0xf]
    %v399 = vld [vmem:[#allocation6 + $0x4] sm:$0xf]
    %v400 = vld [vmem:[#allocation6 + $0x8] sm:$0xf]
    %v401 = vld [vmem:[#allocation6 + $0xc] sm:$0xf]
    %v402 = vld [vmem:[#allocation6 + $0x10] sm:$0xf]
    %v403 = vld [vmem:[#allocation6 + $0x14] sm:$0xf]
    %v404 = vld [vmem:[#allocation6 + $0x18] sm:$0xf]
    %v405 = vld [vmem:[#allocation6 + $0x1c] sm:$0xf]
    %v406 = vld [vmem:[#allocation6 + $0x20] sm:$0xf]
    %v407 = vld [vmem:[#allocation6 + $0x24] sm:$0xf]
    %v408 = vld [vmem:[#allocation6 + $0x28] sm:$0xf]
    %v409 = vld [vmem:[#allocation6 + $0x2c] sm:$0xf]
    %v410 = vld [vmem:[#allocation6 + $0x30] sm:$0xf]
    %v411 = vld [vmem:[#allocation6 + $0x34] sm:$0xf]
    %v412 = vld [vmem:[#allocation6 + $0x38] sm:$0xf]
    %v413 = vld [vmem:[#allocation6 + $0x3c] sm:$0xf]
    %v414 = vld [vmem:[%s8] sm:$0x1]
    %v416 = vlaneseq
    %v417 = vshrl.u32 %v416, 7
    %v418 = vsub.s32 0, %v417
    %v419 = vrot.slane %v414, %v418
    %v437 = vunpack.c.l.b16 %v398
    %v438 = vunpack.c.l.b16 %v399
    %v439 = vunpack.c.l.b16 %v400
    %v440 = vunpack.c.l.b16 %v401
    %v441 = vunpack.c.l.b16 %v402
    %v442 = vunpack.c.l.b16 %v403
    %v443 = vunpack.c.l.b16 %v404
    %v444 = vunpack.c.l.b16 %v405
    %v445 = vunpack.c.l.b16 %v406
    %v446 = vunpack.c.l.b16 %v407
    %v447 = vunpack.c.l.b16 %v408
    %v448 = vunpack.c.l.b16 %v409
    %v449 = vunpack.c.l.b16 %v410
    %v450 = vunpack.c.l.b16 %v411
    %v451 = vunpack.c.l.b16 %v412
    %v452 = vunpack.c.l.b16 %v413
    %v453 = vpack.c.b16 %v438, %v437
    %v454 = vpack.c.b16 %v440, %v439
    %v455 = vpack.c.b16 %v442, %v441
    %v456 = vpack.c.b16 %v444, %v443
    %v457 = vpack.c.b16 %v446, %v445
    %v458 = vpack.c.b16 %v448, %v447
    %v459 = vpack.c.b16 %v450, %v449
    %v460 = vpack.c.b16 %v452, %v451
    %469 = vmatprep.subr.bf16.mxu0 0
    %470 = vmatpush1.bf16.msra.mxu0 %v460
    %471 = vmatprep.subr.bf16.mxu0 0
    %472 = vmatpush1.bf16.msra.mxu0 %v459
    %473 = vmatprep.subr.bf16.mxu0 0
    %474 = vmatpush1.bf16.msra.mxu0 %v458
    %475 = vmatprep.subr.bf16.mxu0 0
    %476 = vmatpush1.bf16.msra.mxu0 %v457
    %477 = vmatprep.subr.bf16.mxu0 0
    %478 = vmatpush1.bf16.msra.mxu0 %v456
    %479 = vmatprep.subr.bf16.mxu0 0
    %480 = vmatpush1.bf16.msra.mxu0 %v455
    %481 = vmatprep.subr.bf16.mxu0 0
    %482 = vmatpush1.bf16.msra.mxu0 %v454
    %483 = vmatprep.subr.bf16.mxu0 0
    %484 = vmatpush1.bf16.msra.mxu0 %v453
    %485 = vmatprep.subr.bf16.mxu0 0
    %486 = vmatpush2.bf16.msra.mxu0 0
    %487 = vmatprep.subr.bf16.mxu0 0
    %488 = vmatpush2.bf16.msra.mxu0 0
    %489 = vmatprep.subr.bf16.mxu0 0
    %490 = vmatpush2.bf16.msra.mxu0 0
    %491 = vmatprep.subr.bf16.mxu0 0
    %492 = vmatpush2.bf16.msra.mxu0 0
    %493 = vmatprep.subr.bf16.mxu0 0
    %494 = vmatpush2.bf16.msra.mxu0 0
    %495 = vmatprep.subr.bf16.mxu0 0
    %496 = vmatpush2.bf16.msra.mxu0 0
    %497 = vmatprep.subr.bf16.mxu0 0
    %498 = vmatpush2.bf16.msra.mxu0 0
    %499 = vmatprep.subr.bf16.mxu0 0
    %500 = vmatpush2.bf16.msra.mxu0 0
    %501 = vmatprep.mubr.bf16.mxu0 0
    %502 = vmatmul.mubr.bf16.gmra.mxu0 %v397
    %v503 = vpop.f32.mrf.mxu0
    %v504 = vadd.f32 %v419, %v503
    %v505 = vpop.f32.mrf.mxu0
    %v506 = vpop.f32.mrf.mxu0
    %v507 = vadd.f32 %v419, %v506
    %v508 = vpop.f32.mrf.mxu0
    %509 = vdwg.mxu0
    %v510 = vmax.f32 %v504, 0.0
    %v511 = vmax.f32 %v507, 0.0
    %v512 = vpack.c.bf16 %v511, %v510
    %v513 = vld [vmem:[#allocation7] sm:$0xf]
    %v514 = vld [vmem:[#allocation7 + $0x4] sm:$0xf]
    %v515 = vld [vmem:[#allocation7 + $0x8] sm:$0xf]
    %v516 = vld [vmem:[#allocation7 + $0xc] sm:$0xf]
    %v517 = vld [vmem:[#allocation7 + $0x10] sm:$0xf]
    %v518 = vld [vmem:[#allocation7 + $0x14] sm:$0xf]
    %v519 = vld [vmem:[#allocation7 + $0x18] sm:$0xf]
    %v520 = vld [vmem:[#allocation7 + $0x1c] sm:$0xf]
    %v521 = vld [vmem:[#allocation7 + $0x20] sm:$0xf]
    %v522 = vld [vmem:[#allocation7 + $0x24] sm:$0xf]
    %v523 = vld [vmem:[#allocation7 + $0x28] sm:$0xf]
    %v524 = vld [vmem:[#allocation7 + $0x2c] sm:$0xf]
    %v525 = vld [vmem:[#allocation7 + $0x30] sm:$0xf]
    %v526 = vld [vmem:[#allocation7 + $0x34] sm:$0xf]
    %v527 = vld [vmem:[#allocation7 + $0x38] sm:$0xf]
    %v528 = vld [vmem:[#allocation7 + $0x3c] sm:$0xf]
    %v529 = vld [vmem:[%s10] sm:$0x1]
    %v531 = vlaneseq
    %v532 = vshrl.u32 %v531, 7
    %v533 = vsub.s32 0, %v532
    %v534 = vrot.slane %v529, %v533
    %v552 = vunpack.c.l.b16 %v513
    %v553 = vunpack.c.l.b16 %v514
    %v554 = vunpack.c.l.b16 %v515
    %v555 = vunpack.c.l.b16 %v516
    %v556 = vunpack.c.l.b16 %v517
    %v557 = vunpack.c.l.b16 %v518
    %v558 = vunpack.c.l.b16 %v519
    %v559 = vunpack.c.l.b16 %v520
    %v560 = vunpack.c.l.b16 %v521
    %v561 = vunpack.c.l.b16 %v522
    %v562 = vunpack.c.l.b16 %v523
    %v563 = vunpack.c.l.b16 %v524
    %v564 = vunpack.c.l.b16 %v525
    %v565 = vunpack.c.l.b16 %v526
    %v566 = vunpack.c.l.b16 %v527
    %v567 = vunpack.c.l.b16 %v528
    %v568 = vpack.c.b16 %v553, %v552
    %v569 = vpack.c.b16 %v555, %v554
    %v570 = vpack.c.b16 %v557, %v556
    %v571 = vpack.c.b16 %v559, %v558
    %v572 = vpack.c.b16 %v561, %v560
    %v573 = vpack.c.b16 %v563, %v562
    %v574 = vpack.c.b16 %v565, %v564
    %v575 = vpack.c.b16 %v567, %v566
    %584 = vmatprep.subr.bf16.mxu0 0
    %585 = vmatpush1.bf16.msra.mxu0 %v575
    %586 = vmatprep.subr.bf16.mxu0 0
    %587 = vmatpush1.bf16.msra.mxu0 %v574
    %588 = vmatprep.subr.bf16.mxu0 0
    %589 = vmatpush1.bf16.msra.mxu0 %v573
    %590 = vmatprep.subr.bf16.mxu0 0
    %591 = vmatpush1.bf16.msra.mxu0 %v572
    %592 = vmatprep.subr.bf16.mxu0 0
    %593 = vmatpush1.bf16.msra.mxu0 %v571
    %594 = vmatprep.subr.bf16.mxu0 0
    %595 = vmatpush1.bf16.msra.mxu0 %v570
    %596 = vmatprep.subr.bf16.mxu0 0
    %597 = vmatpush1.bf16.msra.mxu0 %v569
    %598 = vmatprep.subr.bf16.mxu0 0
    %599 = vmatpush1.bf16.msra.mxu0 %v568
    %600 = vmatprep.subr.bf16.mxu0 0
    %601 = vmatpush2.bf16.msra.mxu0 0
    %602 = vmatprep.subr.bf16.mxu0 0
    %603 = vmatpush2.bf16.msra.mxu0 0
    %604 = vmatprep.subr.bf16.mxu0 0
    %605 = vmatpush2.bf16.msra.mxu0 0
    %606 = vmatprep.subr.bf16.mxu0 0
    %607 = vmatpush2.bf16.msra.mxu0 0
    %608 = vmatprep.subr.bf16.mxu0 0
    %609 = vmatpush2.bf16.msra.mxu0 0
    %610 = vmatprep.subr.bf16.mxu0 0
    %611 = vmatpush2.bf16.msra.mxu0 0
    %612 = vmatprep.subr.bf16.mxu0 0
    %613 = vmatpush2.bf16.msra.mxu0 0
    %614 = vmatprep.subr.bf16.mxu0 0
    %615 = vmatpush2.bf16.msra.mxu0 0
    %616 = vmatprep.mubr.bf16.mxu0 0
    %617 = vmatmul.mubr.bf16.gmra.mxu0 %v512
    %v618 = vpop.f32.mrf.mxu0
    %v619 = vadd.f32 %v534, %v618
    %v620 = vpop.f32.mrf.mxu0
    %v621 = vpop.f32.mrf.mxu0
    %v622 = vadd.f32 %v534, %v621
    %v623 = vpop.f32.mrf.mxu0
    %624 = vdwg.mxu0
    %v625 = vsub.f32 0.0, %v619
    %v626 = vsub.f32 0.0, %v622
    %v627 = vmul.f32 %v625, 1.442695
    %v628 = vpow.pop %v627
    %v629 = vmul.f32 %v626, 1.442695
    %v630 = vpow.pop %v629
    %v631 = vadd.f32 %v628, 1.0
    %v632 = vadd.f32 %v630, 1.0
    %v633 = vrcp.pop %v631
    %v634 = vrcp.pop %v632
    %v635 = vpack.c.bf16 %v634, %v633
    %v637 = vunpack.c.l.b16 %v635
    %v638 = vunpack.c.h.b16 %v635
    %v639 = vpack.c.b16 %v637, %v637
    %v640 = vpack.c.b16 %v638, %v638
    %643 = vst [vmem:[%s11] sm:$0xf] %v639
    %644 = vst [vmem:[%s11 + $0x4] sm:$0xf] %v640
    // Predicated region
    $region62: #{discriminator_forward.1} parent=1 // pred_check
      _
    $region63: #{discriminator_forward.1} parent=1 // pred_check_branch
      %646 = sbr.rel (0) target = $region65
    $region64: #{discriminator_forward.1} parent=1 // pred_region
      _
    $region65: #{discriminator_forward.1} parent=1 // pred_fallthru
      _
    // Predicated region
    $region66: #{discriminator_forward.1} parent=1 // pred_check
      _
    $region67: #{discriminator_forward.1} parent=1 // pred_check_branch
      %648 = sbr.rel (0) target = $region69
    $region68: #{discriminator_forward.1} parent=1 // pred_region
      _
    $region69: #{discriminator_forward.1} parent=1 // pred_fallthru
      _
    %649 = vsyncpa [#allocation3], 1
    %650 = vsyncpa [#allocation5], 1
    %651 = vsyncpa [#allocation8], 1

</llo_original>
